<compile_context>
chip_gen: v7x
topology: tpu7x:2x2x1
jax: 0.10.0
libtpu: 0.0.40
codegen_flags: <defaults>
</compile_context>

<pallas_src>
import functools

import jax
import jax.numpy as jnp
from jax.experimental import pallas as pl
from jax.experimental.pallas import tpu as pltpu


# ------------------------------ kernel ---------------------------------------

def make_encode_kernel(n_layer, kernel_sizes, k, c_final, bt, L):
    N = bt * L  # batch*seq folded onto lanes

    def kernel(x_ref, *refs):
        out_state_ref, out_top_ref = refs[-2], refs[-1]
        prefs = refs[:-2]

        # (bt, L, C_in) -> (C_in, N): channels on sublanes, batch*seq on lanes.
        x = x_ref[...]
        x0 = x.reshape(N, x.shape[-1]).T                  # (C_in, N) f32
        x0_bf = x0.astype(jnp.bfloat16)

        # Hoisted lane index -> position within each length-L segment.
        lane = jax.lax.broadcasted_iota(jnp.int32, (1, N), 1)
        pos = lane % L

        def im2col(inp, ks):
            """inp (Cin, N) f32 -> stacked shifted copies (ks*Cin, N) bf16."""
            pad = ks // 2
            pieces = []
            for t in range(ks):
                d = t - pad
                if d == 0:
                    pieces.append(inp)
                else:
                    rolled = pltpu.roll(inp, shift=(-d) % N, axis=1)
                    valid = jnp.logical_and(pos + d >= 0, pos + d < L)
                    pieces.append(jnp.where(valid, rolled, 0.0))
            stacked = pieces[0] if ks == 1 else jnp.concatenate(pieces, axis=0)
            return stacked.astype(jnp.bfloat16)

        idx = 0
        h = None
        for i in range(n_layer):
            w_ref, b_ref = prefs[idx], prefs[idx + 1]
            idx += 2
            inp = x0 if i == 0 else h
            y = jnp.dot(w_ref[...], im2col(inp, kernel_sizes[i]),
                        preferred_element_type=jnp.float32)
            if i > 0:
                r_ref = prefs[idx]
                idx += 1
                y = y + jnp.dot(r_ref[...], x0_bf,
                                preferred_element_type=jnp.float32)
            h = jnp.maximum(y + b_ref[...], 0.0)          # bias(es) pre-combined

        out_state_ref[0] = h                              # (c_final, N), lane-dense

        # top-k over the L axis, per channel, per batch element.
        tops = []
        for b in range(bt):
            seg = h[:, b * L:(b + 1) * L]                 # static slice (c_final, L)
            if k == 1:
                tops.append(jnp.max(seg, axis=1, keepdims=True))
            else:
                cur = seg
                col = jax.lax.broadcasted_iota(jnp.int32, seg.shape, 1)
                for j in range(k):
                    tops.append(jnp.max(cur, axis=1, keepdims=True))
                    if j + 1 < k:
                        amax = jnp.argmax(cur, axis=1)[:, None]
                        cur = jnp.where(col == amax, -jnp.inf, cur)
        top = tops[0] if len(tops) == 1 else jnp.concatenate(tops, axis=1)
        out_top_ref[0] = top                              # (c_final, bt*k)

    return kernel


# ------------------------------ wrapper ---------------------------------------

def _pick_bt(B, L):
    """Batch elements per grid step; aim for >=128 lanes, must divide B."""
    bt = min(B, max(1, 128 // max(L, 1)))
    while B % bt:
        bt -= 1
    return bt


def encode_forward(state, params, *, n_layer, conv, kernel_sizes, k=1):
    """state: (B, L, C_in) f32 -> (state_out (B,L,conv*n_layer),
                                   topk_out  (B, k*conv*n_layer))."""
    B, L, c_in = state.shape
    c_final = conv * n_layer
    assert all(ks % 2 == 1 for ks in kernel_sizes), "odd kernel sizes keep L fixed"
    assert max(ks // 2 for ks in kernel_sizes) < L, "roll+mask needs pad < L"
    assert 1 <= k <= L

    bt = _pick_bt(B, L)
    nb = B // bt
    N = bt * L

    inputs = [state.astype(jnp.float32)]
    in_specs = [pl.BlockSpec((bt, L, c_in), lambda i: (i, 0, 0))]
    for li in range(n_layer):
        W, bias = params["W"][li], params["b"][li]        # (ks,Cout,Cin), (Cout,1)
        ks, cout, cin = W.shape
        # Pack (ks, Cout, Cin) -> (Cout, ks*Cin) matching the in-kernel im2col
        # stacking order; cast matmul operands to bf16 once on host.
        w_packed = jnp.transpose(W, (1, 0, 2)).reshape(cout, ks * cin)
        w_packed = w_packed.astype(jnp.bfloat16)
        bias_total = bias if li == 0 else bias + params["rb"][li]
        inputs += [w_packed, bias_total.astype(jnp.float32)]
        in_specs += [pl.BlockSpec(w_packed.shape, lambda i: (0, 0)),
                     pl.BlockSpec(bias_total.shape, lambda i: (0, 0))]
        if li > 0:
            R = params["R"][li].astype(jnp.bfloat16)      # (Cout, C_in)
            inputs.append(R)
            in_specs.append(pl.BlockSpec(R.shape, lambda i: (0, 0)))

    out_shape = (jax.ShapeDtypeStruct((nb, c_final, N), jnp.float32),
                 jax.ShapeDtypeStruct((nb, c_final, bt * k), jnp.float32))
    out_specs = (pl.BlockSpec((1, c_final, N), lambda i: (i, 0, 0)),
                 pl.BlockSpec((1, c_final, bt * k), lambda i: (i, 0, 0)))

    kernel = make_encode_kernel(n_layer, tuple(kernel_sizes), k, c_final, bt, L)
    out_state_k, out_top_k = pl.pallas_call(
        kernel,
        grid=(nb,),
        in_specs=in_specs,
        out_specs=out_specs,
        out_shape=out_shape,
        compiler_params=pltpu.CompilerParams(dimension_semantics=("parallel",)),
    )(*inputs)

    # Host-side re-layout to the module's output convention (cheap glue).
    out_state = (out_state_k.reshape(nb, c_final, bt, L)
                 .transpose(0, 2, 3, 1).reshape(B, L, c_final))
    out_top = (out_top_k.reshape(nb, c_final, bt, k)
               .transpose(0, 2, 3, 1).reshape(B, k * c_final))
    return out_state, out_top


# ------------------------- pure-JAX reference ---------------------------------

def encode_reference(state, params, *, n_layer, conv, kernel_sizes, k=1):
    s = jnp.transpose(state, (0, 2, 1))          # (B, C_in, L)
    copy = s
    for i in range(n_layer):
        W, bias = params["W"][i], params["b"][i]
        Wt = jnp.transpose(W, (1, 2, 0))         # (Cout, Cin, ks)
        pad = kernel_sizes[i] // 2
        y = jax.lax.conv_general_dilated(
            s, Wt, window_strides=(1,), padding=[(pad, pad)],
            dimension_numbers=("NCH", "OIH", "NCH")) + bias[None]
        if i == 0:
            s = jnp.maximum(y, 0.0)
        else:
            R, rb = params["R"][i], params["rb"][i]
            res = jnp.einsum("oc,bcl->bol", R, copy) + rb[None]
            s = jnp.maximum(y + res, 0.0)
    out = jnp.transpose(s, (0, 2, 1))            # (B, L, C_final)
    top = jax.lax.top_k(jnp.transpose(out, (0, 2, 1)), k)[0]       # (B, Cf, k)
    top = jnp.transpose(top, (0, 2, 1)).reshape(out.shape[0], -1)  # (B, k*Cf)
    return out, top


# --------------------------------- main ----------------------------------------

if __name__ == "__main__":
    B, L, C_IN = 2, 16, 4
    N_LAYER, CONV, K = 3, 8, 1
    KERNEL_SIZES = [3, 5, 3]                     # odd sizes keep L fixed

    key = jax.random.PRNGKey(0)
    keys = iter(jax.random.split(key, 64))

    params = {"W": [], "b": [], "R": [None], "rb": [None]}
    for i in range(N_LAYER):
        cin = C_IN if i == 0 else CONV * i
        cout = CONV * (i + 1) if i > 0 else CONV
        ks = KERNEL_SIZES[i]
        params["W"].append(0.1 * jax.random.normal(next(keys), (ks, cout, cin),
                                                   jnp.float32))
        params["b"].append(0.1 * jax.random.normal(next(keys), (cout, 1),
                                                   jnp.float32))
        if i > 0:
            params["R"].append(0.1 * jax.random.normal(next(keys), (cout, C_IN),
                                                       jnp.float32))
            params["rb"].append(0.1 * jax.random.normal(next(keys), (cout, 1),
                                                        jnp.float32))

    state = jax.random.normal(next(keys), (B, L, C_IN), jnp.float32)

    run = functools.partial(encode_forward, n_layer=N_LAYER, conv=CONV,
                            kernel_sizes=KERNEL_SIZES, k=K)
    out_state, out_top = run(state, params)
    jax.block_until_ready((out_state, out_top))

    ref_state, ref_top = encode_reference(state, params, n_layer=N_LAYER,
                                          conv=CONV, kernel_sizes=KERNEL_SIZES,
                                          k=K)
    assert out_state.shape == (B, L, CONV * N_LAYER)
    assert out_top.shape == (B, K * CONV * N_LAYER)
    # bf16 matmul operands in the kernel -> compare against the f32 reference
    # with a bf16-appropriate tolerance.
    assert jnp.allclose(out_state, ref_state, atol=2e-2, rtol=2e-2)
    assert jnp.allclose(out_top, ref_top, atol=2e-2, rtol=2e-2)

    print("KERNEL_OK")
</pallas_src>

<mosaic_0001>
module attributes {stable_mosaic.version = 11 : i64} {
  func.func @kernel(%arg0: i32, %arg1: memref<2x16x4xf32, #tpu.memory_space<vmem>>, %arg2: memref<8x12xbf16, #tpu.memory_space<vmem>>, %arg3: memref<8x1xf32, #tpu.memory_space<vmem>>, %arg4: memref<16x40xbf16, #tpu.memory_space<vmem>>, %arg5: memref<16x1xf32, #tpu.memory_space<vmem>>, %arg6: memref<16x4xbf16, #tpu.memory_space<vmem>>, %arg7: memref<24x48xbf16, #tpu.memory_space<vmem>>, %arg8: memref<24x1xf32, #tpu.memory_space<vmem>>, %arg9: memref<24x4xbf16, #tpu.memory_space<vmem>>, %arg10: memref<1x24x32xf32, #tpu.memory_space<vmem>>, %arg11: memref<1x24x2xf32, #tpu.memory_space<vmem>>) attributes {dimension_semantics = [#tpu.dimension_semantics<parallel>], iteration_bounds = array<i64: 1>, scalar_prefetch = 0 : i64, scratch_operands = 0 : i64, tpu.core_type = #tpu.core_type<tc>, window_params = [{transform_indices = @transform_0, window_bounds = array<i64: 2, 16, 4>}, {pipeline_mode = #tpu.pipeline_mode<synchronous>, transform_indices = @transform_1, window_bounds = array<i64: 8, 12>}, {pipeline_mode = #tpu.pipeline_mode<synchronous>, transform_indices = @transform_2, window_bounds = array<i64: 8, 1>}, {pipeline_mode = #tpu.pipeline_mode<synchronous>, transform_indices = @transform_3, window_bounds = array<i64: 16, 40>}, {pipeline_mode = #tpu.pipeline_mode<synchronous>, transform_indices = @transform_4, window_bounds = array<i64: 16, 1>}, {pipeline_mode = #tpu.pipeline_mode<synchronous>, transform_indices = @transform_5, window_bounds = array<i64: 16, 4>}, {pipeline_mode = #tpu.pipeline_mode<synchronous>, transform_indices = @transform_6, window_bounds = array<i64: 24, 48>}, {pipeline_mode = #tpu.pipeline_mode<synchronous>, transform_indices = @transform_7, window_bounds = array<i64: 24, 1>}, {pipeline_mode = #tpu.pipeline_mode<synchronous>, transform_indices = @transform_8, window_bounds = array<i64: 24, 4>}, {transform_indices = @transform_9, window_bounds = array<i64: 1, 24, 32>}, {transform_indices = @transform_10, window_bounds = array<i64: 1, 24, 2>}]} {
    %c0 = arith.constant 0 : index
    %c0_0 = arith.constant 0 : index
    %c0_1 = arith.constant 0 : index
    %0 = vector.load %arg1[%c0, %c0_0, %c0_1] : memref<2x16x4xf32, #tpu.memory_space<vmem>>, vector<2x16x4xf32>
    %1 = vector.shape_cast %0 : vector<2x16x4xf32> to vector<32x4xf32>
    %2 = tpu.transpose %1, [1, 0] : vector<32x4xf32> -> vector<4x32xf32>
    %3 = arith.truncf %2 : vector<4x32xf32> to vector<4x32xbf16>
    %4 = tpu.iota {dimensions = array<i32: 1>} : vector<1x32xi32>
    %c16_i32 = arith.constant 16 : i32
    %c0_i32 = arith.constant 0 : i32
    %5 = arith.cmpi eq, %c16_i32, %c0_i32 : i32
    %c1_i32 = arith.constant 1 : i32
    %6 = arith.select %5, %c1_i32, %c16_i32 : i32
    %7 = vector.broadcast %6 : i32 to vector<1x32xi32>
    %8 = arith.remsi %4, %7 : vector<1x32xi32>
    %c0_i32_2 = arith.constant 0 : i32
    %9 = vector.broadcast %c0_i32_2 : i32 to vector<1x32xi32>
    %10 = arith.cmpi ne, %8, %9 : vector<1x32xi32>
    %c0_i32_3 = arith.constant 0 : i32
    %11 = vector.broadcast %c0_i32_3 : i32 to vector<1x32xi32>
    %12 = arith.cmpi slt, %8, %11 : vector<1x32xi32>
    %c0_i32_4 = arith.constant 0 : i32
    %13 = arith.cmpi slt, %6, %c0_i32_4 : i32
    %14 = vector.broadcast %13 : i1 to vector<1x32xi1>
    %15 = vector.broadcast %14 : vector<1x32xi1> to vector<1x32xi1>
    %16 = arith.xori %12, %15 : vector<1x32xi1>
    %17 = arith.andi %16, %10 : vector<1x32xi1>
    %18 = vector.broadcast %6 : i32 to vector<1x32xi32>
    %19 = arith.addi %8, %18 : vector<1x32xi32>
    %20 = arith.select %17, %19, %8 : vector<1x32xi1>, vector<1x32xi32>
    %c0_5 = arith.constant 0 : index
    %c0_6 = arith.constant 0 : index
    %21 = vector.load %arg2[%c0_5, %c0_6] : memref<8x12xbf16, #tpu.memory_space<vmem>>, vector<8x12xbf16>
    %c1_i32_7 = arith.constant 1 : i32
    %22 = tpu.dynamic_rotate %2 by %c1_i32_7 dim 1 : vector<4x32xf32>, i32 -> vector<4x32xf32>
    %c-1_i32 = arith.constant -1 : i32
    %23 = vector.broadcast %c-1_i32 : i32 to vector<1x32xi32>
    %24 = arith.addi %20, %23 : vector<1x32xi32>
    %c0_i32_8 = arith.constant 0 : i32
    %25 = vector.broadcast %c0_i32_8 : i32 to vector<1x32xi32>
    %26 = arith.cmpi sge, %24, %25 : vector<1x32xi32>
    %c-1_i32_9 = arith.constant -1 : i32
    %27 = vector.broadcast %c-1_i32_9 : i32 to vector<1x32xi32>
    %28 = arith.addi %20, %27 : vector<1x32xi32>
    %c16_i32_10 = arith.constant 16 : i32
    %29 = vector.broadcast %c16_i32_10 : i32 to vector<1x32xi32>
    %30 = arith.cmpi slt, %28, %29 : vector<1x32xi32>
    %31 = arith.andi %26, %30 : vector<1x32xi1>
    %cst = arith.constant 0.000000e+00 : f32
    %32 = vector.shape_cast %31 : vector<1x32xi1> to vector<1x32xi1>
    %33 = vector.broadcast %32 : vector<1x32xi1> to vector<4x32xi1>
    %34 = vector.broadcast %cst : f32 to vector<4x32xf32>
    %35 = arith.select %33, %22, %34 : vector<4x32xi1>, vector<4x32xf32>
    %c31_i32 = arith.constant 31 : i32
    %36 = tpu.dynamic_rotate %2 by %c31_i32 dim 1 : vector<4x32xf32>, i32 -> vector<4x32xf32>
    %c1_i32_11 = arith.constant 1 : i32
    %37 = vector.broadcast %c1_i32_11 : i32 to vector<1x32xi32>
    %38 = arith.addi %20, %37 : vector<1x32xi32>
    %c0_i32_12 = arith.constant 0 : i32
    %39 = vector.broadcast %c0_i32_12 : i32 to vector<1x32xi32>
    %40 = arith.cmpi sge, %38, %39 : vector<1x32xi32>
    %c1_i32_13 = arith.constant 1 : i32
    %41 = vector.broadcast %c1_i32_13 : i32 to vector<1x32xi32>
    %42 = arith.addi %20, %41 : vector<1x32xi32>
    %c16_i32_14 = arith.constant 16 : i32
    %43 = vector.broadcast %c16_i32_14 : i32 to vector<1x32xi32>
    %44 = arith.cmpi slt, %42, %43 : vector<1x32xi32>
    %45 = arith.andi %40, %44 : vector<1x32xi1>
    %cst_15 = arith.constant 0.000000e+00 : f32
    %46 = vector.shape_cast %45 : vector<1x32xi1> to vector<1x32xi1>
    %47 = vector.broadcast %46 : vector<1x32xi1> to vector<4x32xi1>
    %48 = vector.broadcast %cst_15 : f32 to vector<4x32xf32>
    %49 = arith.select %47, %36, %48 : vector<4x32xi1>, vector<4x32xf32>
    %50 = tpu.concatenate %35, %2, %49 in 0 : vector<4x32xf32>, vector<4x32xf32>, vector<4x32xf32> -> vector<12x32xf32>
    %51 = arith.truncf %50 : vector<12x32xf32> to vector<12x32xbf16>
    %cst_16 = arith.constant dense<0.000000e+00> : vector<8x32xf32>
    %52 = tpu.matmul %21, %51, %cst_16 {dimension_numbers = #tpu.dot_dimension_numbers<[1], [0], [0], [1], [0, 0, 1, 1], [], []>} : vector<8x12xbf16>, vector<12x32xbf16>, vector<8x32xf32> -> vector<8x32xf32>
    %c0_17 = arith.constant 0 : index
    %c0_18 = arith.constant 0 : index
    %53 = vector.load %arg3[%c0_17, %c0_18] : memref<8x1xf32, #tpu.memory_space<vmem>>, vector<8x1xf32>
    %54 = vector.broadcast %53 : vector<8x1xf32> to vector<8x32xf32>
    %55 = arith.addf %52, %54 : vector<8x32xf32>
    %cst_19 = arith.constant 0.000000e+00 : f32
    %56 = vector.broadcast %cst_19 : f32 to vector<8x32xf32>
    %57 = arith.maximumf %55, %56 : vector<8x32xf32>
    %c0_20 = arith.constant 0 : index
    %c0_21 = arith.constant 0 : index
    %58 = vector.load %arg4[%c0_20, %c0_21] : memref<16x40xbf16, #tpu.memory_space<vmem>>, vector<16x40xbf16>
    %c2_i32 = arith.constant 2 : i32
    %59 = tpu.dynamic_rotate %57 by %c2_i32 dim 1 : vector<8x32xf32>, i32 -> vector<8x32xf32>
    %c-2_i32 = arith.constant -2 : i32
    %60 = vector.broadcast %c-2_i32 : i32 to vector<1x32xi32>
    %61 = arith.addi %20, %60 : vector<1x32xi32>
    %c0_i32_22 = arith.constant 0 : i32
    %62 = vector.broadcast %c0_i32_22 : i32 to vector<1x32xi32>
    %63 = arith.cmpi sge, %61, %62 : vector<1x32xi32>
    %c-2_i32_23 = arith.constant -2 : i32
    %64 = vector.broadcast %c-2_i32_23 : i32 to vector<1x32xi32>
    %65 = arith.addi %20, %64 : vector<1x32xi32>
    %c16_i32_24 = arith.constant 16 : i32
    %66 = vector.broadcast %c16_i32_24 : i32 to vector<1x32xi32>
    %67 = arith.cmpi slt, %65, %66 : vector<1x32xi32>
    %68 = arith.andi %63, %67 : vector<1x32xi1>
    %cst_25 = arith.constant 0.000000e+00 : f32
    %69 = vector.shape_cast %68 : vector<1x32xi1> to vector<1x32xi1>
    %70 = vector.broadcast %69 : vector<1x32xi1> to vector<8x32xi1>
    %71 = vector.broadcast %cst_25 : f32 to vector<8x32xf32>
    %72 = arith.select %70, %59, %71 : vector<8x32xi1>, vector<8x32xf32>
    %c1_i32_26 = arith.constant 1 : i32
    %73 = tpu.dynamic_rotate %57 by %c1_i32_26 dim 1 : vector<8x32xf32>, i32 -> vector<8x32xf32>
    %c-1_i32_27 = arith.constant -1 : i32
    %74 = vector.broadcast %c-1_i32_27 : i32 to vector<1x32xi32>
    %75 = arith.addi %20, %74 : vector<1x32xi32>
    %c0_i32_28 = arith.constant 0 : i32
    %76 = vector.broadcast %c0_i32_28 : i32 to vector<1x32xi32>
    %77 = arith.cmpi sge, %75, %76 : vector<1x32xi32>
    %c-1_i32_29 = arith.constant -1 : i32
    %78 = vector.broadcast %c-1_i32_29 : i32 to vector<1x32xi32>
    %79 = arith.addi %20, %78 : vector<1x32xi32>
    %c16_i32_30 = arith.constant 16 : i32
    %80 = vector.broadcast %c16_i32_30 : i32 to vector<1x32xi32>
    %81 = arith.cmpi slt, %79, %80 : vector<1x32xi32>
    %82 = arith.andi %77, %81 : vector<1x32xi1>
    %cst_31 = arith.constant 0.000000e+00 : f32
    %83 = vector.shape_cast %82 : vector<1x32xi1> to vector<1x32xi1>
    %84 = vector.broadcast %83 : vector<1x32xi1> to vector<8x32xi1>
    %85 = vector.broadcast %cst_31 : f32 to vector<8x32xf32>
    %86 = arith.select %84, %73, %85 : vector<8x32xi1>, vector<8x32xf32>
    %c31_i32_32 = arith.constant 31 : i32
    %87 = tpu.dynamic_rotate %57 by %c31_i32_32 dim 1 : vector<8x32xf32>, i32 -> vector<8x32xf32>
    %c1_i32_33 = arith.constant 1 : i32
    %88 = vector.broadcast %c1_i32_33 : i32 to vector<1x32xi32>
    %89 = arith.addi %20, %88 : vector<1x32xi32>
    %c0_i32_34 = arith.constant 0 : i32
    %90 = vector.broadcast %c0_i32_34 : i32 to vector<1x32xi32>
    %91 = arith.cmpi sge, %89, %90 : vector<1x32xi32>
    %c1_i32_35 = arith.constant 1 : i32
    %92 = vector.broadcast %c1_i32_35 : i32 to vector<1x32xi32>
    %93 = arith.addi %20, %92 : vector<1x32xi32>
    %c16_i32_36 = arith.constant 16 : i32
    %94 = vector.broadcast %c16_i32_36 : i32 to vector<1x32xi32>
    %95 = arith.cmpi slt, %93, %94 : vector<1x32xi32>
    %96 = arith.andi %91, %95 : vector<1x32xi1>
    %cst_37 = arith.constant 0.000000e+00 : f32
    %97 = vector.shape_cast %96 : vector<1x32xi1> to vector<1x32xi1>
    %98 = vector.broadcast %97 : vector<1x32xi1> to vector<8x32xi1>
    %99 = vector.broadcast %cst_37 : f32 to vector<8x32xf32>
    %100 = arith.select %98, %87, %99 : vector<8x32xi1>, vector<8x32xf32>
    %c30_i32 = arith.constant 30 : i32
    %101 = tpu.dynamic_rotate %57 by %c30_i32 dim 1 : vector<8x32xf32>, i32 -> vector<8x32xf32>
    %c2_i32_38 = arith.constant 2 : i32
    %102 = vector.broadcast %c2_i32_38 : i32 to vector<1x32xi32>
    %103 = arith.addi %20, %102 : vector<1x32xi32>
    %c0_i32_39 = arith.constant 0 : i32
    %104 = vector.broadcast %c0_i32_39 : i32 to vector<1x32xi32>
    %105 = arith.cmpi sge, %103, %104 : vector<1x32xi32>
    %c2_i32_40 = arith.constant 2 : i32
    %106 = vector.broadcast %c2_i32_40 : i32 to vector<1x32xi32>
    %107 = arith.addi %20, %106 : vector<1x32xi32>
    %c16_i32_41 = arith.constant 16 : i32
    %108 = vector.broadcast %c16_i32_41 : i32 to vector<1x32xi32>
    %109 = arith.cmpi slt, %107, %108 : vector<1x32xi32>
    %110 = arith.andi %105, %109 : vector<1x32xi1>
    %cst_42 = arith.constant 0.000000e+00 : f32
    %111 = vector.shape_cast %110 : vector<1x32xi1> to vector<1x32xi1>
    %112 = vector.broadcast %111 : vector<1x32xi1> to vector<8x32xi1>
    %113 = vector.broadcast %cst_42 : f32 to vector<8x32xf32>
    %114 = arith.select %112, %101, %113 : vector<8x32xi1>, vector<8x32xf32>
    %115 = tpu.concatenate %72, %86, %57, %100, %114 in 0 : vector<8x32xf32>, vector<8x32xf32>, vector<8x32xf32>, vector<8x32xf32>, vector<8x32xf32> -> vector<40x32xf32>
    %116 = arith.truncf %115 : vector<40x32xf32> to vector<40x32xbf16>
    %cst_43 = arith.constant dense<0.000000e+00> : vector<16x32xf32>
    %117 = tpu.matmul %58, %116, %cst_43 {dimension_numbers = #tpu.dot_dimension_numbers<[1], [0], [0], [1], [0, 0, 1, 1], [], []>} : vector<16x40xbf16>, vector<40x32xbf16>, vector<16x32xf32> -> vector<16x32xf32>
    %c0_44 = arith.constant 0 : index
    %c0_45 = arith.constant 0 : index
    %118 = vector.load %arg6[%c0_44, %c0_45] : memref<16x4xbf16, #tpu.memory_space<vmem>>, vector<16x4xbf16>
    %cst_46 = arith.constant dense<0.000000e+00> : vector<16x32xf32>
    %119 = tpu.matmul %118, %3, %cst_46 {dimension_numbers = #tpu.dot_dimension_numbers<[1], [0], [0], [1], [0, 0, 1, 1], [], []>} : vector<16x4xbf16>, vector<4x32xbf16>, vector<16x32xf32> -> vector<16x32xf32>
    %120 = arith.addf %117, %119 : vector<16x32xf32>
    %c0_47 = arith.constant 0 : index
    %c0_48 = arith.constant 0 : index
    %121 = vector.load %arg5[%c0_47, %c0_48] : memref<16x1xf32, #tpu.memory_space<vmem>>, vector<16x1xf32>
    %122 = vector.broadcast %121 : vector<16x1xf32> to vector<16x32xf32>
    %123 = arith.addf %120, %122 : vector<16x32xf32>
    %cst_49 = arith.constant 0.000000e+00 : f32
    %124 = vector.broadcast %cst_49 : f32 to vector<16x32xf32>
    %125 = arith.maximumf %123, %124 : vector<16x32xf32>
    %c0_50 = arith.constant 0 : index
    %c0_51 = arith.constant 0 : index
    %126 = vector.load %arg7[%c0_50, %c0_51] : memref<24x48xbf16, #tpu.memory_space<vmem>>, vector<24x48xbf16>
    %c1_i32_52 = arith.constant 1 : i32
    %127 = tpu.dynamic_rotate %125 by %c1_i32_52 dim 1 : vector<16x32xf32>, i32 -> vector<16x32xf32>
    %c-1_i32_53 = arith.constant -1 : i32
    %128 = vector.broadcast %c-1_i32_53 : i32 to vector<1x32xi32>
    %129 = arith.addi %20, %128 : vector<1x32xi32>
    %c0_i32_54 = arith.constant 0 : i32
    %130 = vector.broadcast %c0_i32_54 : i32 to vector<1x32xi32>
    %131 = arith.cmpi sge, %129, %130 : vector<1x32xi32>
    %c-1_i32_55 = arith.constant -1 : i32
    %132 = vector.broadcast %c-1_i32_55 : i32 to vector<1x32xi32>
    %133 = arith.addi %20, %132 : vector<1x32xi32>
    %c16_i32_56 = arith.constant 16 : i32
    %134 = vector.broadcast %c16_i32_56 : i32 to vector<1x32xi32>
    %135 = arith.cmpi slt, %133, %134 : vector<1x32xi32>
    %136 = arith.andi %131, %135 : vector<1x32xi1>
    %cst_57 = arith.constant 0.000000e+00 : f32
    %137 = vector.shape_cast %136 : vector<1x32xi1> to vector<1x32xi1>
    %138 = vector.broadcast %137 : vector<1x32xi1> to vector<16x32xi1>
    %139 = vector.broadcast %cst_57 : f32 to vector<16x32xf32>
    %140 = arith.select %138, %127, %139 : vector<16x32xi1>, vector<16x32xf32>
    %c31_i32_58 = arith.constant 31 : i32
    %141 = tpu.dynamic_rotate %125 by %c31_i32_58 dim 1 : vector<16x32xf32>, i32 -> vector<16x32xf32>
    %c1_i32_59 = arith.constant 1 : i32
    %142 = vector.broadcast %c1_i32_59 : i32 to vector<1x32xi32>
    %143 = arith.addi %20, %142 : vector<1x32xi32>
    %c0_i32_60 = arith.constant 0 : i32
    %144 = vector.broadcast %c0_i32_60 : i32 to vector<1x32xi32>
    %145 = arith.cmpi sge, %143, %144 : vector<1x32xi32>
    %c1_i32_61 = arith.constant 1 : i32
    %146 = vector.broadcast %c1_i32_61 : i32 to vector<1x32xi32>
    %147 = arith.addi %20, %146 : vector<1x32xi32>
    %c16_i32_62 = arith.constant 16 : i32
    %148 = vector.broadcast %c16_i32_62 : i32 to vector<1x32xi32>
    %149 = arith.cmpi slt, %147, %148 : vector<1x32xi32>
    %150 = arith.andi %145, %149 : vector<1x32xi1>
    %cst_63 = arith.constant 0.000000e+00 : f32
    %151 = vector.shape_cast %150 : vector<1x32xi1> to vector<1x32xi1>
    %152 = vector.broadcast %151 : vector<1x32xi1> to vector<16x32xi1>
    %153 = vector.broadcast %cst_63 : f32 to vector<16x32xf32>
    %154 = arith.select %152, %141, %153 : vector<16x32xi1>, vector<16x32xf32>
    %155 = tpu.concatenate %140, %125, %154 in 0 : vector<16x32xf32>, vector<16x32xf32>, vector<16x32xf32> -> vector<48x32xf32>
    %156 = arith.truncf %155 : vector<48x32xf32> to vector<48x32xbf16>
    %cst_64 = arith.constant dense<0.000000e+00> : vector<24x32xf32>
    %157 = tpu.matmul %126, %156, %cst_64 {dimension_numbers = #tpu.dot_dimension_numbers<[1], [0], [0], [1], [0, 0, 1, 1], [], []>} : vector<24x48xbf16>, vector<48x32xbf16>, vector<24x32xf32> -> vector<24x32xf32>
    %c0_65 = arith.constant 0 : index
    %c0_66 = arith.constant 0 : index
    %158 = vector.load %arg9[%c0_65, %c0_66] : memref<24x4xbf16, #tpu.memory_space<vmem>>, vector<24x4xbf16>
    %cst_67 = arith.constant dense<0.000000e+00> : vector<24x32xf32>
    %159 = tpu.matmul %158, %3, %cst_67 {dimension_numbers = #tpu.dot_dimension_numbers<[1], [0], [0], [1], [0, 0, 1, 1], [], []>} : vector<24x4xbf16>, vector<4x32xbf16>, vector<24x32xf32> -> vector<24x32xf32>
    %160 = arith.addf %157, %159 : vector<24x32xf32>
    %c0_68 = arith.constant 0 : index
    %c0_69 = arith.constant 0 : index
    %161 = vector.load %arg8[%c0_68, %c0_69] : memref<24x1xf32, #tpu.memory_space<vmem>>, vector<24x1xf32>
    %162 = vector.broadcast %161 : vector<24x1xf32> to vector<24x32xf32>
    %163 = arith.addf %160, %162 : vector<24x32xf32>
    %cst_70 = arith.constant 0.000000e+00 : f32
    %164 = vector.broadcast %cst_70 : f32 to vector<24x32xf32>
    %165 = arith.maximumf %163, %164 : vector<24x32xf32>
    %c0_71 = arith.constant 0 : index
    %c0_72 = arith.constant 0 : index
    %c0_73 = arith.constant 0 : index
    %166 = vector.load %arg10[%c0_71, %c0_72, %c0_73] : memref<1x24x32xf32, #tpu.memory_space<vmem>>, vector<1x24x32xf32>
    %167 = vector.shape_cast %166 : vector<1x24x32xf32> to vector<24x32xf32>
    %168 = vector.shape_cast %165 : vector<24x32xf32> to vector<1x24x32xf32>
    tpu.vector_store %arg10[%c0_71, %c0_72, %c0_73], %168 {strides = array<i32>} : memref<1x24x32xf32, #tpu.memory_space<vmem>>, vector<1x24x32xf32>,
    %169 = vector.extract_strided_slice %165 {offsets = [0, 0], sizes = [24, 16], strides = [1, 1]} : vector<24x32xf32> to vector<24x16xf32>
    %cst_74 = arith.constant dense<0xFF800000> : vector<24xf32>
    %170 = vector.multi_reduction <maximumf>, %169, %cst_74 [1] : vector<24x16xf32> to vector<24xf32>
    %171 = vector.shape_cast %170 : vector<24xf32> to vector<24x1xf32>
    %172 = vector.extract_strided_slice %165 {offsets = [0, 16], sizes = [24, 16], strides = [1, 1]} : vector<24x32xf32> to vector<24x16xf32>
    %cst_75 = arith.constant dense<0xFF800000> : vector<24xf32>
    %173 = vector.multi_reduction <maximumf>, %172, %cst_75 [1] : vector<24x16xf32> to vector<24xf32>
    %174 = vector.shape_cast %173 : vector<24xf32> to vector<24x1xf32>
    %175 = tpu.concatenate %171, %174 in 1 : vector<24x1xf32>, vector<24x1xf32> -> vector<24x2xf32>
    %c0_76 = arith.constant 0 : index
    %c0_77 = arith.constant 0 : index
    %c0_78 = arith.constant 0 : index
    %176 = vector.load %arg11[%c0_76, %c0_77, %c0_78] : memref<1x24x2xf32, #tpu.memory_space<vmem>>, vector<1x24x2xf32>
    %177 = vector.shape_cast %176 : vector<1x24x2xf32> to vector<24x2xf32>
    %178 = vector.shape_cast %175 : vector<24x2xf32> to vector<1x24x2xf32>
    tpu.vector_store %arg11[%c0_76, %c0_77, %c0_78], %178 {strides = array<i32>} : memref<1x24x2xf32, #tpu.memory_space<vmem>>, vector<1x24x2xf32>,
    return
  }
  func.func @transform_0(%arg0: i32) -> (i32, i32, i32) {
    %c0_i32 = arith.constant 0 : i32
    %c0_i32_0 = arith.constant 0 : i32
    %c0_i32_1 = arith.constant 0 : i32
    return %arg0, %c0_i32, %c0_i32_0 : i32, i32, i32
  }
  func.func @transform_1(%arg0: i32) -> (i32, i32) {
    %c0_i32 = arith.constant 0 : i32
    %c0_i32_0 = arith.constant 0 : i32
    %c0_i32_1 = arith.constant 0 : i32
    return %c0_i32, %c0_i32_0 : i32, i32
  }
  func.func @transform_2(%arg0: i32) -> (i32, i32) {
    %c0_i32 = arith.constant 0 : i32
    %c0_i32_0 = arith.constant 0 : i32
    %c0_i32_1 = arith.constant 0 : i32
    return %c0_i32, %c0_i32_0 : i32, i32
  }
  func.func @transform_3(%arg0: i32) -> (i32, i32) {
    %c0_i32 = arith.constant 0 : i32
    %c0_i32_0 = arith.constant 0 : i32
    %c0_i32_1 = arith.constant 0 : i32
    return %c0_i32, %c0_i32_0 : i32, i32
  }
  func.func @transform_4(%arg0: i32) -> (i32, i32) {
    %c0_i32 = arith.constant 0 : i32
    %c0_i32_0 = arith.constant 0 : i32
    %c0_i32_1 = arith.constant 0 : i32
    return %c0_i32, %c0_i32_0 : i32, i32
  }
  func.func @transform_5(%arg0: i32) -> (i32, i32) {
    %c0_i32 = arith.constant 0 : i32
    %c0_i32_0 = arith.constant 0 : i32
    %c0_i32_1 = arith.constant 0 : i32
    return %c0_i32, %c0_i32_0 : i32, i32
  }
  func.func @transform_6(%arg0: i32) -> (i32, i32) {
    %c0_i32 = arith.constant 0 : i32
    %c0_i32_0 = arith.constant 0 : i32
    %c0_i32_1 = arith.constant 0 : i32
    return %c0_i32, %c0_i32_0 : i32, i32
  }
  func.func @transform_7(%arg0: i32) -> (i32, i32) {
    %c0_i32 = arith.constant 0 : i32
    %c0_i32_0 = arith.constant 0 : i32
    %c0_i32_1 = arith.constant 0 : i32
    return %c0_i32, %c0_i32_0 : i32, i32
  }
  func.func @transform_8(%arg0: i32) -> (i32, i32) {
    %c0_i32 = arith.constant 0 : i32
    %c0_i32_0 = arith.constant 0 : i32
    %c0_i32_1 = arith.constant 0 : i32
    return %c0_i32, %c0_i32_0 : i32, i32
  }
  func.func @transform_9(%arg0: i32) -> (i32, i32, i32) {
    %c0_i32 = arith.constant 0 : i32
    %c0_i32_0 = arith.constant 0 : i32
    %c0_i32_1 = arith.constant 0 : i32
    return %arg0, %c0_i32, %c0_i32_0 : i32, i32, i32
  }
  func.func @transform_10(%arg0: i32) -> (i32, i32, i32) {
    %c0_i32 = arith.constant 0 : i32
    %c0_i32_0 = arith.constant 0 : i32
    %c0_i32_1 = arith.constant 0 : i32
    return %arg0, %c0_i32, %c0_i32_0 : i32, i32, i32
  }
}

</mosaic_0001>

<llo_original>
// kernel: tpu_custom_call.1
$region0: #{tpu_custom_call.1}
  #allocation0 [shape = 'u32[]', space=smem, size = 0x4, offset = 0x4, fixed_abs, tag = 'smem constant byte address 0x4 - core index']
  #allocation1 [shape = 'u32[144,128]{1,0:T(1,128)}', space=vmem, size = 0x12000, scoped, tag = 'internal scratch']
  %s0 = inlined_call_operand.vmem [shape: f32[2,16,4], index: 0, kind: input, shape index: {}]
  %s1 = inlined_call_operand.vmem [shape: bf16[8,12], index: 1, kind: input, shape index: {}]
  %s2 = inlined_call_operand.vmem [shape: f32[8,1], index: 2, kind: input, shape index: {}]
  %s3 = inlined_call_operand.vmem [shape: bf16[16,40], index: 3, kind: input, shape index: {}]
  %s4 = inlined_call_operand.vmem [shape: f32[16,1], index: 4, kind: input, shape index: {}]
  %s5 = inlined_call_operand.vmem [shape: bf16[16,4], index: 5, kind: input, shape index: {}]
  %s6 = inlined_call_operand.vmem [shape: bf16[24,48], index: 6, kind: input, shape index: {}]
  %s7 = inlined_call_operand.vmem [shape: f32[24,1], index: 7, kind: input, shape index: {}]
  %s8 = inlined_call_operand.vmem [shape: bf16[24,4], index: 8, kind: input, shape index: {}]
  %s9 = inlined_call_operand.hbm [shape: f32[1,24,32], index: 9, kind: output, shape index: {0}]
  %s10 = inlined_call_operand.vmem [shape: f32[1,24,2], index: 10, kind: output, shape index: {1}]
  %11 = xla_tuple %s9, %s10
  %s12 = sld [smem:[#allocation0]]
  $region54: #{tpu_custom_call.1} parent=0
    _
  %s14 = ssub.s32 1, %s12
  %s15 = scalar_select 0, %s14, %s12
  $region1: #{tpu_custom_call.1} parent=0
    #allocation2 [shape = 'u8[12288]{0}', space=vmem, size = 0x3000, scoped, tag = 'output window, operand 0, single buffered']
    #allocation3 [shape = 's32[1]{0}', space=sflag, size = 0x4, scoped, tag = 'scoped memory for tpu_custom_call.1']
    %16 = vsyncpa [#allocation3], 0
    // Predicated region
    $region2: #{tpu_custom_call.1} parent=1 // pred_check
      _
    $region3: #{tpu_custom_call.1} parent=1 // pred_check_branch
      %18 = sbr.rel (0) target = $region5
    $region4: #{tpu_custom_call.1} parent=1 // pred_region
      _
    $region5: #{tpu_custom_call.1} parent=1 // pred_fallthru
      _
    // Predicated region
    $region6: #{tpu_custom_call.1} parent=1 // pred_check
      _
    $region7: #{tpu_custom_call.1} parent=1 // pred_check_branch
      %20 = sbr.rel (0) target = $region9
    $region8: #{tpu_custom_call.1} parent=1 // pred_region
      _
    $region9: #{tpu_custom_call.1} parent=1 // pred_fallthru
      _
    // Predicated region
    $region10: #{tpu_custom_call.1} parent=1 // pred_check
      _
    $region11: #{tpu_custom_call.1} parent=1 // pred_check_branch
      %22 = sbr.rel (0) target = $region13
    $region12: #{tpu_custom_call.1} parent=1 // pred_region
      _
    $region13: #{tpu_custom_call.1} parent=1 // pred_fallthru
      _
    // Predicated region
    $region14: #{tpu_custom_call.1} parent=1 // pred_check
      _
    $region15: #{tpu_custom_call.1} parent=1 // pred_check_branch
      %24 = sbr.rel (0) target = $region17
    $region16: #{tpu_custom_call.1} parent=1 // pred_region
      _
    $region17: #{tpu_custom_call.1} parent=1 // pred_fallthru
      _
    // Predicated region
    $region18: #{tpu_custom_call.1} parent=1 // pred_check
      _
    $region19: #{tpu_custom_call.1} parent=1 // pred_check_branch
      %26 = sbr.rel (0) target = $region21
    $region20: #{tpu_custom_call.1} parent=1 // pred_region
      _
    $region21: #{tpu_custom_call.1} parent=1 // pred_fallthru
      _
    // Predicated region
    $region22: #{tpu_custom_call.1} parent=1 // pred_check
      _
    $region23: #{tpu_custom_call.1} parent=1 // pred_check_branch
      %28 = sbr.rel (0) target = $region25
    $region24: #{tpu_custom_call.1} parent=1 // pred_region
      _
    $region25: #{tpu_custom_call.1} parent=1 // pred_fallthru
      _
    // Predicated region
    $region26: #{tpu_custom_call.1} parent=1 // pred_check
      _
    $region27: #{tpu_custom_call.1} parent=1 // pred_check_branch
      %30 = sbr.rel (0) target = $region29
    $region28: #{tpu_custom_call.1} parent=1 // pred_region
      _
    $region29: #{tpu_custom_call.1} parent=1 // pred_fallthru
      _
    // Predicated region
    $region30: #{tpu_custom_call.1} parent=1 // pred_check
      _
    $region31: #{tpu_custom_call.1} parent=1 // pred_check_branch
      %32 = sbr.rel (0) target = $region33
    $region32: #{tpu_custom_call.1} parent=1 // pred_region
      _
    $region33: #{tpu_custom_call.1} parent=1 // pred_fallthru
      _
    // Predicated region
    $region34: #{tpu_custom_call.1} parent=1 // pred_check
      _
    $region35: #{tpu_custom_call.1} parent=1 // pred_check_branch
      %34 = sbr.rel (0) target = $region37
    $region36: #{tpu_custom_call.1} parent=1 // pred_region
      _
    $region37: #{tpu_custom_call.1} parent=1 // pred_fallthru
      _
    %v36 = vld [vmem:[%s0] sm:$0xff]
    %v37 = vld [vmem:[%s0 + $0x8] sm:$0xff]
    %v38 = vld [vmem:[%s0 + $0x10] sm:$0xff]
    %v39 = vld [vmem:[%s0 + $0x18] sm:$0xff]
    %40 = vxpose.xlu0.b32.start [1/16] %v36, 128
    %41 = vxpose.xlu0.b32.cont [2/16] %v37, 128
    %42 = vxpose.xlu0.b32.cont [3/16] %v38, 128
    %43 = vxpose.xlu0.b32.cont [4/16] %v39, 128
    %44 = vxpose.xlu0.b32.cont [5/16] 0.0, 128
    %45 = vxpose.xlu0.b32.cont [6/16] 0.0, 128
    %46 = vxpose.xlu0.b32.cont [7/16] 0.0, 128
    %47 = vxpose.xlu0.b32.cont [8/16] 0.0, 128
    %48 = vxpose.xlu0.b32.cont [9/16] 0.0, 128
    %49 = vxpose.xlu0.b32.cont [10/16] 0.0, 128
    %50 = vxpose.xlu0.b32.cont [11/16] 0.0, 128
    %51 = vxpose.xlu0.b32.cont [12/16] 0.0, 128
    %52 = vxpose.xlu0.b32.cont [13/16] 0.0, 128
    %53 = vxpose.xlu0.b32.cont [14/16] 0.0, 128
    %54 = vxpose.xlu0.b32.cont [15/16] 0.0, 128
    %55 = vxpose.xlu0.b32.end [16/16] 0.0, 128
    %v56 = vpop.trf.xlu0
    %v57 = vpop.trf.xlu0
    %v58 = vpop.trf.xlu0
    %v59 = vpop.trf.xlu0
    %v60 = vpop.trf.xlu0
    %v61 = vpop.trf.xlu0
    %v62 = vpop.trf.xlu0
    %v63 = vpop.trf.xlu0
    %v64 = vpop.trf.xlu0
    %v65 = vpop.trf.xlu0
    %v66 = vpop.trf.xlu0
    %v67 = vpop.trf.xlu0
    %v68 = vpop.trf.xlu0
    %v69 = vpop.trf.xlu0
    %v70 = vpop.trf.xlu0
    %v71 = vpop.trf.xlu0
    %v72 = vpack.c.bf16 %v56, %v56
    %v73 = vlaneseq
    %v74 = vand.u32 %v73, 127
    %vm75 = vcmp.lt.s32.totalorder %v74, 0
    %v76 = vsub.s32 0, %v74
    %v77 = vsel %vm75, %v76, %v74
    %v78 = vshrl.u32 %v77, 4
    %v79 = vand.u32 %v77, 15
    %v80 = vsub.s32 0, %v79
    %v81 = vsel %vm75, %v80, %v79
    %vm82 = vcmp.ne.s32.totalorder %v81, 0
    %vm83 = vcmp.lt.s32.totalorder %v81, 0
    %vm84 = vmand %vm83, %vm82
    %v85 = vadd.s32 %v81, 16
    %v86 = vsel %vm84, %v85, %v81
    %v87 = vld [vmem:[%s1] sm:$0xf]
    %vm88 = vcmask 1047808
    %89 = vrot.lane.b32.xlu0 %v56, 32
    %v90 = vpop.permute.xlu0 %89
    %v91 = vsel %vm88, %v90, %v56
    %92 = vrot.lane.b32.xlu0 %v91, 32
    %v93 = vpop.permute.xlu0 %92
    %v94 = vsel %vm88, %v93, %v56
    %v95 = vadd.s32 %v86, 4294967295
    %vm96 = vcmp.ge.s32.totalorder %v95, 0
    %vm97 = vcmp.lt.s32.totalorder %v95, 16
    %vm98 = vmand %vm96, %vm97
    %v99 = vsel %vm98, 1, 0
    %vm100 = vcmp.eq.s32.totalorder %v99, 1
    %102 = vrot.lane.b32.xlu0 %v94, 97
    %v103 = vpop.permute.xlu0 %102
    %v105 = vsel %vm100, %v103, 0.0
    %v106 = vadd.s32 %v86, 1
    %vm107 = vcmp.ge.s32.totalorder %v106, 0
    %vm108 = vcmp.lt.s32.totalorder %v106, 16
    %vm109 = vmand %vm107, %vm108
    %v110 = vsel %vm109, 1, 0
    %vm111 = vcmp.eq.s32.totalorder %v110, 1
    %112 = vrot.lane.b32.xlu0 %v94, 127
    %v113 = vpop.permute.xlu0 %112
    %v115 = vsel %vm111, %v113, 0.0
    %v117 = vrot.slane %v56, 4
    %vm119 = vcmask 1043456
    %v120 = vsel %vm119, %v105, %v117
    %v121 = vpack.c.bf16 %v115, %v120
    %v122 = vld [vmem:[%s2] sm:$0xff]
    %124 = vset.pattern.permute.xlu0 0
    %125 = vperm.xlu0 %124, %v122
    %v126 = vpop.permute.xlu0 %125
    %vm128 = vcmask 97280
    %v130 = vsel %vm128, %v87, 0
    %vm132 = vcmask 1045504
    %v134 = vsel %vm132, %v121, 0
    %136 = vmatprep.subr.bf16.mxu0 0
    %137 = vmatpush1.bf16.msra.mxu0 %v134
    %138 = vmatprep.subr.bf16.mxu0 0
    %139 = vmatpush1.bf16.msra.mxu0 0
    %140 = vmatprep.subr.bf16.mxu0 0
    %141 = vmatpush1.bf16.msra.mxu0 0
    %142 = vmatprep.subr.bf16.mxu0 0
    %143 = vmatpush1.bf16.msra.mxu0 0
    %144 = vmatprep.subr.bf16.mxu0 0
    %145 = vmatpush1.bf16.msra.mxu0 0
    %146 = vmatprep.subr.bf16.mxu0 0
    %147 = vmatpush1.bf16.msra.mxu0 0
    %148 = vmatprep.subr.bf16.mxu0 0
    %149 = vmatpush1.bf16.msra.mxu0 0
    %150 = vmatprep.subr.bf16.mxu0 0
    %151 = vmatpush1.bf16.msra.mxu0 0
    %152 = vmatprep.subr.bf16.mxu0 0
    %153 = vmatpush1.bf16.msra.mxu0 0
    %154 = vmatprep.subr.bf16.mxu0 0
    %155 = vmatpush1.bf16.msra.mxu0 0
    %156 = vmatprep.subr.bf16.mxu0 0
    %157 = vmatpush1.bf16.msra.mxu0 0
    %158 = vmatprep.subr.bf16.mxu0 0
    %159 = vmatpush1.bf16.msra.mxu0 0
    %160 = vmatprep.subr.bf16.mxu0 0
    %161 = vmatpush1.bf16.msra.mxu0 0
    %162 = vmatprep.subr.bf16.mxu0 0
    %163 = vmatpush1.bf16.msra.mxu0 0
    %164 = vmatprep.subr.bf16.mxu0 0
    %165 = vmatpush1.bf16.msra.mxu0 0
    %166 = vmatprep.subr.bf16.mxu0 0
    %167 = vmatpush1.bf16.msra.mxu0 0
    %168 = vmatprep.mubr.bf16.mxu0 0
    %169 = vmatmul.mubr.bf16.gmra.mrb[0].mxu0 %v130
    %v170 = vpop.f32.mrb[0].mxu0
    %v171 = vadd.f32 %v126, %v170
    %v172 = vpop.f32.mrb[0].mxu0
    %v173 = vpop.f32.mrb[0].mxu0
    %v174 = vpop.f32.mrb[0].mxu0
    %175 = vdwg.mxu0
    %v176 = vmax.f32 %v171, 0.0
    %v177 = vld [vmem:[%s3] sm:$0xf]
    %v178 = vld [vmem:[%s3 + $0x4] sm:$0xf]
    %179 = vrot.lane.b32.xlu0 %v176, 32
    %v180 = vpop.permute.xlu0 %179
    %v181 = vsel %vm88, %v180, %v176
    %182 = vrot.lane.b32.xlu0 %v181, 32
    %v183 = vpop.permute.xlu0 %182
    %v184 = vsel %vm88, %v183, %v176
    %v185 = vadd.s32 %v86, 4294967294
    %vm186 = vcmp.ge.s32.totalorder %v185, 0
    %vm187 = vcmp.lt.s32.totalorder %v185, 16
    %vm188 = vmand %vm186, %vm187
    %v189 = vsel %vm188, 1, 0
    %vm190 = vcmp.eq.s32.totalorder %v189, 1
    %192 = vrot.lane.b32.xlu0 %v184, 98
    %v193 = vpop.permute.xlu0 %192
    %v195 = vsel %vm190, %v193, 0.0
    %196 = vrot.lane.b32.xlu0 %v184, 97
    %v197 = vpop.permute.xlu0 %196
    %v199 = vsel %vm100, %v197, 0.0
    %200 = vrot.lane.b32.xlu0 %v184, 127
    %v201 = vpop.permute.xlu0 %200
    %v203 = vsel %vm111, %v201, 0.0
    %v204 = vadd.s32 %v86, 2
    %vm205 = vcmp.ge.s32.totalorder %v204, 0
    %vm206 = vcmp.lt.s32.totalorder %v204, 16
    %vm207 = vmand %vm205, %vm206
    %v208 = vsel %vm207, 1, 0
    %vm209 = vcmp.eq.s32.totalorder %v208, 1
    %210 = vrot.lane.b32.xlu0 %v184, 126
    %v211 = vpop.permute.xlu0 %210
    %v213 = vsel %vm209, %v211, 0.0
    %v214 = vpack.c.bf16 %v199, %v195
    %v215 = vpack.c.bf16 %v203, %v176
    %v216 = vpack.c.bf16 %v213, %v213
    %v217 = vld [vmem:[%s5] sm:$0xf]
    %v218 = vld [vmem:[%s5 + $0x4] sm:$0xf]
    %v221 = vunpack.c.l.b16 %v217
    %v222 = vunpack.c.l.b16 %v218
    %v223 = vpack.c.b16 %v222, %v221
    %vm224 = vcmask 31744
    %v226 = vsel %vm224, %v223, 0
    %vm228 = vcmask 1041408
    %v230 = vsel %vm228, %v72, 0
    %232 = vmatprep.subr.bf16.mxu0 0
    %233 = vmatpush1.bf16.msra.mxu0 %v230
    %234 = vmatprep.subr.bf16.mxu0 0
    %235 = vmatpush1.bf16.msra.mxu0 0
    %236 = vmatprep.subr.bf16.mxu0 0
    %237 = vmatpush1.bf16.msra.mxu0 0
    %238 = vmatprep.subr.bf16.mxu0 0
    %239 = vmatpush1.bf16.msra.mxu0 0
    %240 = vmatprep.subr.bf16.mxu0 0
    %241 = vmatpush1.bf16.msra.mxu0 0
    %242 = vmatprep.subr.bf16.mxu0 0
    %243 = vmatpush1.bf16.msra.mxu0 0
    %244 = vmatprep.subr.bf16.mxu0 0
    %245 = vmatpush1.bf16.msra.mxu0 0
    %246 = vmatprep.subr.bf16.mxu0 0
    %247 = vmatpush1.bf16.msra.mxu0 0
    %248 = vmatprep.subr.bf16.mxu0 0
    %249 = vmatpush1.bf16.msra.mxu0 0
    %250 = vmatprep.subr.bf16.mxu0 0
    %251 = vmatpush1.bf16.msra.mxu0 0
    %252 = vmatprep.subr.bf16.mxu0 0
    %253 = vmatpush1.bf16.msra.mxu0 0
    %254 = vmatprep.subr.bf16.mxu0 0
    %255 = vmatpush1.bf16.msra.mxu0 0
    %256 = vmatprep.subr.bf16.mxu0 0
    %257 = vmatpush1.bf16.msra.mxu0 0
    %258 = vmatprep.subr.bf16.mxu0 0
    %259 = vmatpush1.bf16.msra.mxu0 0
    %260 = vmatprep.subr.bf16.mxu0 0
    %261 = vmatpush1.bf16.msra.mxu0 0
    %262 = vmatprep.subr.bf16.mxu0 0
    %263 = vmatpush1.bf16.msra.mxu0 0
    %264 = vmatprep.mubr.bf16.mxu0 0
    %265 = vmatmul.mubr.bf16.gmra.mrb[0].mxu0 %v226
    %v266 = vpop.f32.mrb[0].mxu0
    %v267 = vadd.f32 0.0, %v266
    %v268 = vpop.f32.mrb[0].mxu0
    %v269 = vpop.f32.mrb[0].mxu0
    %v270 = vadd.f32 0.0, %v269
    %v271 = vpop.f32.mrb[0].mxu0
    %272 = vdwg.mxu0
    %v275 = vunpack.c.l.b16 %v177
    %v276 = vunpack.c.l.b16 %v178
    %v277 = vpack.c.b16 %v276, %v275
    %vm278 = vcmask 326656
    %v280 = vsel %vm278, %v277, 0
    %v283 = vsel %vm119, %v216, 0
    %285 = vmatprep.subr.bf16.mxu0 0
    %286 = vmatpush1.bf16.msra.mxu0 %v214
    %287 = vmatprep.subr.bf16.mxu0 0
    %288 = vmatpush1.bf16.msra.mxu0 %v215
    %289 = vmatprep.subr.bf16.mxu0 0
    %290 = vmatpush1.bf16.msra.mxu0 %v283
    %291 = vmatprep.subr.bf16.mxu0 0
    %292 = vmatpush1.bf16.msra.mxu0 0
    %293 = vmatprep.subr.bf16.mxu0 0
    %294 = vmatpush1.bf16.msra.mxu0 0
    %295 = vmatprep.subr.bf16.mxu0 0
    %296 = vmatpush1.bf16.msra.mxu0 0
    %297 = vmatprep.subr.bf16.mxu0 0
    %298 = vmatpush1.bf16.msra.mxu0 0
    %299 = vmatprep.subr.bf16.mxu0 0
    %300 = vmatpush1.bf16.msra.mxu0 0
    %301 = vmatprep.subr.bf16.mxu0 0
    %302 = vmatpush1.bf16.msra.mxu0 0
    %303 = vmatprep.subr.bf16.mxu0 0
    %304 = vmatpush1.bf16.msra.mxu0 0
    %305 = vmatprep.subr.bf16.mxu0 0
    %306 = vmatpush1.bf16.msra.mxu0 0
    %307 = vmatprep.subr.bf16.mxu0 0
    %308 = vmatpush1.bf16.msra.mxu0 0
    %309 = vmatprep.subr.bf16.mxu0 0
    %310 = vmatpush1.bf16.msra.mxu0 0
    %311 = vmatprep.subr.bf16.mxu0 0
    %312 = vmatpush1.bf16.msra.mxu0 0
    %313 = vmatprep.subr.bf16.mxu0 0
    %314 = vmatpush1.bf16.msra.mxu0 0
    %315 = vmatprep.subr.bf16.mxu0 0
    %316 = vmatpush1.bf16.msra.mxu0 0
    %317 = vmatprep.mubr.bf16.mxu0 0
    %318 = vmatmul.mubr.bf16.gmra.mrb[0].mxu0 %v280
    %v319 = vpop.f32.mrb[0].mxu0
    %v320 = vadd.f32 %v267, %v319
    %v321 = vpop.f32.mrb[0].mxu0
    %v322 = vpop.f32.mrb[0].mxu0
    %v323 = vadd.f32 %v270, %v322
    %v324 = vpop.f32.mrb[0].mxu0
    %325 = vdwg.mxu0
    %v326 = vld [vmem:[%s4] sm:$0xff]
    %v327 = vld [vmem:[%s4 + $0x8] sm:$0xff]
    %329 = vset.pattern.permute.xlu0 0
    %330 = vperm.xlu0 %329, %v326
    %v331 = vpop.permute.xlu0 %330
    %334 = vset.pattern.permute.xlu0 0
    %335 = vperm.xlu0 %334, %v327
    %v336 = vpop.permute.xlu0 %335
    %v338 = vadd.f32 %v320, %v331
    %v339 = vadd.f32 %v323, %v336
    %v340 = vmax.f32 %v338, 0.0
    %v341 = vmax.f32 %v339, 0.0
    %v342 = vld [vmem:[%s6] sm:$0xf]
    %v343 = vld [vmem:[%s6 + $0x4] sm:$0xf]
    %v344 = vld [vmem:[%s6 + $0x8] sm:$0xf]
    %345 = vrot.lane.b32.xlu0 %v340, 32
    %v346 = vpop.permute.xlu0 %345
    %v347 = vsel %vm88, %v346, %v340
    %348 = vrot.lane.b32.xlu0 %v341, 32
    %v349 = vpop.permute.xlu0 %348
    %v350 = vsel %vm88, %v349, %v341
    %351 = vrot.lane.b32.xlu0 %v347, 32
    %v352 = vpop.permute.xlu0 %351
    %353 = vrot.lane.b32.xlu0 %v350, 32
    %v354 = vpop.permute.xlu0 %353
    %v355 = vsel %vm88, %v352, %v340
    %v356 = vsel %vm88, %v354, %v341
    %359 = vrot.lane.b32.xlu0 %v355, 97
    %v360 = vpop.permute.xlu0 %359
    %361 = vrot.lane.b32.xlu0 %v356, 97
    %v362 = vpop.permute.xlu0 %361
    %v365 = vsel %vm100, %v360, 0.0
    %v366 = vsel %vm100, %v362, 0.0
    %367 = vrot.lane.b32.xlu0 %v355, 127
    %v368 = vpop.permute.xlu0 %367
    %369 = vrot.lane.b32.xlu0 %v356, 127
    %v370 = vpop.permute.xlu0 %369
    %v373 = vsel %vm111, %v368, 0.0
    %v374 = vsel %vm111, %v370, 0.0
    %v375 = vpack.c.bf16 %v366, %v365
    %v376 = vpack.c.bf16 %v341, %v340
    %v377 = vpack.c.bf16 %v374, %v373
    %v378 = vld [vmem:[%s8] sm:$0xf]
    %v379 = vld [vmem:[%s8 + $0x4] sm:$0xf]
    %v380 = vld [vmem:[%s8 + $0x8] sm:$0xf]
    %v384 = vunpack.c.l.b16 %v378
    %v385 = vunpack.c.l.b16 %v379
    %v386 = vunpack.c.l.b16 %v380
    %v387 = vpack.c.b16 %v385, %v384
    %v388 = vpack.c.b16 %v386, %v386
    %v390 = vsel %vm224, %v387, 0
    %v393 = vsel %vm224, %v388, 0
    %395 = vmatprep.subr.bf16.mxu0 0
    %396 = vmatpush1.bf16.msra.mxu0 %v230
    %397 = vmatprep.subr.bf16.mxu0 0
    %398 = vmatpush1.bf16.msra.mxu0 0
    %399 = vmatprep.subr.bf16.mxu0 0
    %400 = vmatpush1.bf16.msra.mxu0 0
    %401 = vmatprep.subr.bf16.mxu0 0
    %402 = vmatpush1.bf16.msra.mxu0 0
    %403 = vmatprep.subr.bf16.mxu0 0
    %404 = vmatpush1.bf16.msra.mxu0 0
    %405 = vmatprep.subr.bf16.mxu0 0
    %406 = vmatpush1.bf16.msra.mxu0 0
    %407 = vmatprep.subr.bf16.mxu0 0
    %408 = vmatpush1.bf16.msra.mxu0 0
    %409 = vmatprep.subr.bf16.mxu0 0
    %410 = vmatpush1.bf16.msra.mxu0 0
    %411 = vmatprep.subr.bf16.mxu0 0
    %412 = vmatpush1.bf16.msra.mxu0 0
    %413 = vmatprep.subr.bf16.mxu0 0
    %414 = vmatpush1.bf16.msra.mxu0 0
    %415 = vmatprep.subr.bf16.mxu0 0
    %416 = vmatpush1.bf16.msra.mxu0 0
    %417 = vmatprep.subr.bf16.mxu0 0
    %418 = vmatpush1.bf16.msra.mxu0 0
    %419 = vmatprep.subr.bf16.mxu0 0
    %420 = vmatpush1.bf16.msra.mxu0 0
    %421 = vmatprep.subr.bf16.mxu0 0
    %422 = vmatpush1.bf16.msra.mxu0 0
    %423 = vmatprep.subr.bf16.mxu0 0
    %424 = vmatpush1.bf16.msra.mxu0 0
    %425 = vmatprep.subr.bf16.mxu0 0
    %426 = vmatpush1.bf16.msra.mxu0 0
    %427 = vmatprep.mubr.bf16.mxu0 0
    %428 = vmatmul.mubr.bf16.gmra.mrb[0].mxu0 %v390
    %v429 = vpop.f32.mrb[0].mxu0
    %v430 = vadd.f32 0.0, %v429
    %v431 = vpop.f32.mrb[0].mxu0
    %v432 = vpop.f32.mrb[0].mxu0
    %v433 = vadd.f32 0.0, %v432
    %v434 = vpop.f32.mrb[0].mxu0
    %435 = vmatprep.mubr.bf16.mxu0 0
    %436 = vmatmul.mubr.bf16.gmra.mrb[0].mxu0 %v393
    %v437 = vpop.f32.mrb[0].mxu0
    %v438 = vadd.f32 0.0, %v437
    %v439 = vpop.f32.mrb[0].mxu0
    %v440 = vpop.f32.mrb[0].mxu0
    %v441 = vpop.f32.mrb[0].mxu0
    %442 = vdwg.mxu0
    %v446 = vunpack.c.l.b16 %v342
    %v447 = vunpack.c.l.b16 %v343
    %v448 = vunpack.c.l.b16 %v344
    %v449 = vpack.c.b16 %v447, %v446
    %v450 = vpack.c.b16 %v448, %v448
    %vm451 = vcmask 392192
    %v453 = vsel %vm451, %v449, 0
    %v456 = vsel %vm451, %v450, 0
    %458 = vmatprep.subr.bf16.mxu0 0
    %459 = vmatpush1.bf16.msra.mxu0 %v375
    %460 = vmatprep.subr.bf16.mxu0 0
    %461 = vmatpush1.bf16.msra.mxu0 %v376
    %462 = vmatprep.subr.bf16.mxu0 0
    %463 = vmatpush1.bf16.msra.mxu0 %v377
    %464 = vmatprep.subr.bf16.mxu0 0
    %465 = vmatpush1.bf16.msra.mxu0 0
    %466 = vmatprep.subr.bf16.mxu0 0
    %467 = vmatpush1.bf16.msra.mxu0 0
    %468 = vmatprep.subr.bf16.mxu0 0
    %469 = vmatpush1.bf16.msra.mxu0 0
    %470 = vmatprep.subr.bf16.mxu0 0
    %471 = vmatpush1.bf16.msra.mxu0 0
    %472 = vmatprep.subr.bf16.mxu0 0
    %473 = vmatpush1.bf16.msra.mxu0 0
    %474 = vmatprep.subr.bf16.mxu0 0
    %475 = vmatpush1.bf16.msra.mxu0 0
    %476 = vmatprep.subr.bf16.mxu0 0
    %477 = vmatpush1.bf16.msra.mxu0 0
    %478 = vmatprep.subr.bf16.mxu0 0
    %479 = vmatpush1.bf16.msra.mxu0 0
    %480 = vmatprep.subr.bf16.mxu0 0
    %481 = vmatpush1.bf16.msra.mxu0 0
    %482 = vmatprep.subr.bf16.mxu0 0
    %483 = vmatpush1.bf16.msra.mxu0 0
    %484 = vmatprep.subr.bf16.mxu0 0
    %485 = vmatpush1.bf16.msra.mxu0 0
    %486 = vmatprep.subr.bf16.mxu0 0
    %487 = vmatpush1.bf16.msra.mxu0 0
    %488 = vmatprep.subr.bf16.mxu0 0
    %489 = vmatpush1.bf16.msra.mxu0 0
    %490 = vmatprep.mubr.bf16.mxu0 0
    %491 = vmatmul.mubr.bf16.gmra.mrb[0].mxu0 %v453
    %v492 = vpop.f32.mrb[0].mxu0
    %v493 = vadd.f32 %v430, %v492
    %v494 = vpop.f32.mrb[0].mxu0
    %v495 = vpop.f32.mrb[0].mxu0
    %v496 = vadd.f32 %v433, %v495
    %v497 = vpop.f32.mrb[0].mxu0
    %498 = vmatprep.mubr.bf16.mxu0 0
    %499 = vmatmul.mubr.bf16.gmra.mrb[0].mxu0 %v456
    %v500 = vpop.f32.mrb[0].mxu0
    %v501 = vadd.f32 %v438, %v500
    %v502 = vpop.f32.mrb[0].mxu0
    %v503 = vpop.f32.mrb[0].mxu0
    %v504 = vpop.f32.mrb[0].mxu0
    %505 = vdwg.mxu0
    %v506 = vld [vmem:[%s7] sm:$0xff]
    %v507 = vld [vmem:[%s7 + $0x8] sm:$0xff]
    %v508 = vld [vmem:[%s7 + $0x10] sm:$0xff]
    %510 = vset.pattern.permute.xlu0 0
    %511 = vperm.xlu0 %510, %v506
    %v512 = vpop.permute.xlu0 %511
    %515 = vset.pattern.permute.xlu0 0
    %516 = vperm.xlu0 %515, %v507
    %v517 = vpop.permute.xlu0 %516
    %520 = vset.pattern.permute.xlu0 0
    %521 = vperm.xlu0 %520, %v508
    %v522 = vpop.permute.xlu0 %521
    %v524 = vadd.f32 %v493, %v512
    %v525 = vadd.f32 %v496, %v517
    %v526 = vadd.f32 %v501, %v522
    %v527 = vmax.f32 %v524, 0.0
    %v528 = vmax.f32 %v525, 0.0
    %v529 = vmax.f32 %v526, 0.0
    %vm530 = vcmask 261120
    %531 = vst.msk [vmem:[#allocation2] sm:$0xff] %vm530, %v527
    %532 = vst.msk [vmem:[#allocation2 + $0x8] sm:$0xff] %vm530, %v528
    %533 = vst.msk [vmem:[#allocation2 + $0x10] sm:$0xff] %vm530, %v529
    %vm534 = vcmask 130048
    %v535 = vsel %vm534, %v527, -inf
    %536 = vmax.xlane.f32.xlu0 %v535
    %v537 = vpop.xlane.xlu0 %536
    %v538 = vsel %vm534, %v528, -inf
    %539 = vmax.xlane.f32.xlu0 %v538
    %v540 = vpop.xlane.xlu0 %539
    %v541 = vsel %vm534, %v529, -inf
    %542 = vmax.xlane.f32.xlu0 %v541
    %v543 = vpop.xlane.xlu0 %542
    %vm544 = vcmask 261248
    %v545 = vsel %vm544, %v527, -inf
    %546 = vmax.xlane.f32.xlu0 %v545
    %v547 = vpop.xlane.xlu0 %546
    %v548 = vsel %vm544, %v528, -inf
    %549 = vmax.xlane.f32.xlu0 %v548
    %v550 = vpop.xlane.xlu0 %549
    %v551 = vsel %vm544, %v529, -inf
    %552 = vmax.xlane.f32.xlu0 %v551
    %v553 = vpop.xlane.xlu0 %552
    %vm554 = vcmask 7168
    %v555 = vsel %vm554, %v537, %v547
    %v556 = vsel %vm554, %v540, %v550
    %v557 = vsel %vm554, %v543, %v553
    %vm558 = vcmask 15360
    %559 = vst.msk [vmem:[%s10] sm:$0xff] %vm558, %v555
    %560 = vst.msk [vmem:[%s10 + $0x8] sm:$0xff] %vm558, %v556
    %561 = vst.msk [vmem:[%s10 + $0x10] sm:$0xff] %vm558, %v557
    // Predicated region
    $region38: #{tpu_custom_call.1} parent=1 // pred_check
      _
    $region39: #{tpu_custom_call.1} parent=1 // pred_check_branch
      %563 = sbr.rel (0) target = $region41
    $region40: #{tpu_custom_call.1} parent=1 // pred_region
      %s565 = ssub.s32 384, 384
      %566 = vsyncadd [#allocation3], %s565
      %s567 = sshll.u32 [#allocation2], 4
      %s568 = int_to_ptr.vmem [resolvable:$true] %s567
      %573 = dma.vmem_to_hbm [thread:$0]  %s568, 384, %s9, [#allocation3], 128, 128, 8
    $region41: #{tpu_custom_call.1} parent=1 // pred_fallthru
      _
    // Predicated region
    $region42: #{tpu_custom_call.1} parent=1 // pred_check
      _
    $region43: #{tpu_custom_call.1} parent=1 // pred_check_branch
      %575 = sbr.rel (0) target = $region45
    $region44: #{tpu_custom_call.1} parent=1 // pred_region
      _
    $region45: #{tpu_custom_call.1} parent=1 // pred_fallthru
      _
    // Predicated region
    $region46: #{tpu_custom_call.1} parent=1 // pred_check
      _
    $region47: #{tpu_custom_call.1} parent=1 // pred_check_branch
      %577 = sbr.rel (0) target = $region49
    $region48: #{tpu_custom_call.1} parent=1 // pred_region
      %578 = dma.done [#allocation3], 384
    $region49: #{tpu_custom_call.1} parent=1 // pred_fallthru
      _
    // Predicated region
    $region50: #{tpu_custom_call.1} parent=1 // pred_check
      _
    $region51: #{tpu_custom_call.1} parent=1 // pred_check_branch
      %580 = sbr.rel (0) target = $region53
    $region52: #{tpu_custom_call.1} parent=1 // pred_region
      _
    $region53: #{tpu_custom_call.1} parent=1 // pred_fallthru
      _
    %581 = vsyncpa [#allocation3], 1

</llo_original>
